<compile_context>
chip_gen: v6e
topology: v6e:2x2x1
jax: 0.10.0
libtpu: 0.0.40
codegen_flags: <defaults>
</compile_context>

<pallas_src>
import functools

import jax
import jax.numpy as jnp
from jax.experimental import pallas as pl
from jax.experimental.pallas import tpu as pltpu


def _round_up(x, m):
    return (x + m - 1) // m * m


def _softplus(x):
    # Stable softplus with a single exp + log1p per element (one EUP slot).
    # NOTE: like jax.nn.softplus / F.softplus this underflows to exactly 0.0
    # for very negative inputs; clamp downstream if validate_args needs >0.
    return jnp.maximum(x, 0.0) + jnp.log1p(jnp.exp(-jnp.abs(x)))


def _nb_decoder_kernel(z_ref,
                       w1_ref, b1_ref,
                       w2_ref, b2_ref,
                       w3_ref, b3_ref,
                       wh_ref, bh_ref,
                       out_ref):
    # Matmuls run on the MXU in the weights' dtype (f32 or bf16); accumulation,
    # bias, ReLU and softplus all stay in f32.
    x = z_ref[...]

    h = jnp.dot(x, w1_ref[...], preferred_element_type=jnp.float32) + b1_ref[...]
    h = jnp.maximum(h, 0.0)

    h = jnp.dot(h.astype(w2_ref.dtype), w2_ref[...],
                preferred_element_type=jnp.float32) + b2_ref[...]
    h = jnp.maximum(h, 0.0)

    h = jnp.dot(h.astype(w3_ref.dtype), w3_ref[...],
                preferred_element_type=jnp.float32) + b3_ref[...]
    h = jnp.maximum(h, 0.0)

    # Fused head: one matmul producing [mu | theta | pad] as a single
    # lane-dense (block_b, head_pad) tile -> one unmasked store.
    head = jnp.dot(h.astype(wh_ref.dtype), wh_ref[...],
                   preferred_element_type=jnp.float32) + bh_ref[...]
    out_ref[...] = _softplus(head).astype(out_ref.dtype)


def _default_block_b(B, compute_dtype):
    sub = 16 if compute_dtype == jnp.bfloat16 else 8
    if B <= 2 * sub:
        return _round_up(B, sub)
    # Aim for >= 2 grid steps so v7x's two TensorCores both participate,
    # cap at 2048 rows so very large batches still pipeline many steps while
    # per-step overhead (~0.35us) stays negligible.  VMEM stays tiny
    # (2048 x 128 f32 double-buffered output ~= 2 MiB).
    return min(2048, _round_up(pl.cdiv(B, 2), sub))


@functools.partial(jax.jit,
                   static_argnames=("block_b", "compute_dtype", "out_dtype"))
def nb_decoder_forward(z, params, *, block_b=None,
                       compute_dtype=jnp.float32, out_dtype=jnp.float32):
    """Runs the fused decoder kernel.

    z: (B, latent_dim) float32
    params: dict with w1..w5 stored as (in, out) and b1..b5 as (1, out), f32
    compute_dtype: dtype fed to the MXU (f32 default; bf16 on v6e/v7x)
    out_dtype: dtype of the stored output slab (f32 default; bf16 to halve
               HBM writeback on large batches)
    returns (mu, theta), each (B, output_dim) in out_dtype
    """
    B, latent_dim = z.shape
    out_dim = params["w4"].shape[1]
    head_dim = 2 * out_dim                      # [mu | theta]
    head_pad = _round_up(head_dim, 128)         # single lane-dense slab

    # --- batch tiling: pipeline DMAs against compute, shard across v7x cores.
    if block_b is None:
        block_b = _default_block_b(B, compute_dtype)
    B_pad = _round_up(B, block_b)
    if B_pad != B:
        z = jnp.pad(z, ((0, B_pad - B), (0, 0)))
    grid = (B_pad // block_b,)

    # --- pack / pad parameters (tiny; done under jit).
    def pad_head(a):
        return jnp.pad(a, ((0, 0), (0, head_pad - head_dim)))

    w1 = params["w1"].astype(compute_dtype)
    w2 = params["w2"].astype(compute_dtype)
    w3 = params["w3"].astype(compute_dtype)
    wh = pad_head(jnp.concatenate([params["w4"], params["w5"]],
                                  axis=1)).astype(compute_dtype)
    b1 = params["b1"].astype(jnp.float32)
    b2 = params["b2"].astype(jnp.float32)
    b3 = params["b3"].astype(jnp.float32)
    bh = pad_head(jnp.concatenate([params["b4"], params["b5"]],
                                  axis=1)).astype(jnp.float32)
    # NOTE: if callers can produce z in compute_dtype upstream, this cast
    # (an extra HBM pass over z) disappears; it is a no-op for f32.
    zc = z.astype(compute_dtype)

    def z_map(i):
        return (i, 0)

    def full_map(i):
        return (0, 0)

    def wspec(w):
        # Weights/biases total < 100 KB; default double-buffering is free.
        return pl.BlockSpec(w.shape, full_map)

    flat_params = [w1, b1, w2, b2, w3, b3, wh, bh]
    in_specs = [pl.BlockSpec((block_b, latent_dim), z_map)]
    in_specs += [wspec(p) for p in flat_params]

    out_specs = pl.BlockSpec((block_b, head_pad), z_map)
    out_shape = jax.ShapeDtypeStruct((B_pad, head_pad), out_dtype)

    out = pl.pallas_call(
        _nb_decoder_kernel,
        out_shape=out_shape,
        grid_spec=pltpu.PrefetchScalarGridSpec(
            num_scalar_prefetch=0,
            grid=grid,
            in_specs=in_specs,
            out_specs=out_specs,
        ),
        compiler_params=pltpu.CompilerParams(
            dimension_semantics=("parallel",)),
    )(zc, *flat_params)

    # Slices are adjacent lanes of one slab; downstream code that can consume
    # the packed (B, 2*out_dim) slab directly should do so to skip this pass.
    mu = out[:B, :out_dim]
    theta = out[:B, out_dim:head_dim]
    return mu, theta


def init_params(key, latent_dim, layers_dims, output_dim):
    """Deterministic init mimicking nn.Linear default (U[-1/sqrt(in), 1/sqrt(in)]).

    Weights stored as (in_features, out_features); biases as (1, out_features).
    """
    dims = [(latent_dim, layers_dims[0]),
            (layers_dims[0], layers_dims[1]),
            (layers_dims[1], layers_dims[2]),
            (layers_dims[2], output_dim),
            (layers_dims[2], output_dim)]
    params = {}
    for i, (fan_in, fan_out) in enumerate(dims, start=1):
        key, kw, kb = jax.random.split(key, 3)
        bound = 1.0 / jnp.sqrt(fan_in)
        params[f"w{i}"] = jax.random.uniform(
            kw, (fan_in, fan_out), jnp.float32, -bound, bound)
        params[f"b{i}"] = jax.random.uniform(
            kb, (1, fan_out), jnp.float32, -bound, bound)
    return params


def _reference_forward(z, params):
    h = jax.nn.relu(z @ params["w1"] + params["b1"])
    h = jax.nn.relu(h @ params["w2"] + params["b2"])
    h = jax.nn.relu(h @ params["w3"] + params["b3"])
    mu = jax.nn.softplus(h @ params["w4"] + params["b4"])
    theta = jax.nn.softplus(h @ params["w5"] + params["b5"])
    return mu, theta


if __name__ == "__main__":
    # small shapes consistent with the MLP decoder
    batch = 8
    latent_dim = 16
    layers_dims = [32, 64, 32]
    output_dim = 24

    key = jax.random.PRNGKey(0)
    key, kz = jax.random.split(key)
    z = jax.random.normal(kz, (batch, latent_dim), jnp.float32)

    params = init_params(key, latent_dim, layers_dims, output_dim)
    mu_ref, theta_ref = _reference_forward(z, params)

    # f32 compute path: tight check against the pure-JAX reference.
    mu, theta = nb_decoder_forward(z, params)
    jax.block_until_ready((mu, theta))
    assert mu.shape == (batch, output_dim) and theta.shape == (batch, output_dim)
    assert jnp.allclose(mu, mu_ref, atol=1e-5, rtol=1e-5)
    assert jnp.allclose(theta, theta_ref, atol=1e-5, rtol=1e-5)
    # mu, theta > 0 as required by NegativeBinomial(validate_args=True)
    assert bool(jnp.all(mu > 0)) and bool(jnp.all(theta > 0))

    # multi-step grid path (padded batch, >=2 grid steps for v7x megacore).
    batch2 = 300
    key, kz2 = jax.random.split(key)
    z2 = jax.random.normal(kz2, (batch2, latent_dim), jnp.float32)
    mu2_ref, theta2_ref = _reference_forward(z2, params)
    mu2, theta2 = nb_decoder_forward(z2, params)
    jax.block_until_ready((mu2, theta2))
    assert mu2.shape == (batch2, output_dim)
    assert jnp.allclose(mu2, mu2_ref, atol=1e-5, rtol=1e-5)
    assert jnp.allclose(theta2, theta2_ref, atol=1e-5, rtol=1e-5)

    # bf16 MXU + bf16 output path (v6e/v7x suggestion): looser tolerance.
    mu_bf, theta_bf = nb_decoder_forward(
        z, params, compute_dtype=jnp.bfloat16, out_dtype=jnp.bfloat16)
    jax.block_until_ready((mu_bf, theta_bf))
    assert mu_bf.dtype == jnp.bfloat16
    assert jnp.allclose(mu_bf.astype(jnp.float32), mu_ref, atol=5e-2, rtol=5e-2)
    assert jnp.allclose(theta_bf.astype(jnp.float32), theta_ref,
                        atol=5e-2, rtol=5e-2)
    assert bool(jnp.all(mu_bf > 0)) and bool(jnp.all(theta_bf > 0))

    # TODO(synk): the torch.distributions NegativeBinomial wrapper object has no
    # Pallas equivalent; the kernel returns its (mu, theta) parameters instead.
    print("KERNEL_OK")
</pallas_src>

<mosaic_0001>
module attributes {stable_mosaic.version = 11 : i64} {
  func.func @_nb_decoder_kernel(%arg0: i32, %arg1: memref<8x16xf32, #tpu.memory_space<vmem>>, %arg2: memref<16x32xf32, #tpu.memory_space<vmem>>, %arg3: memref<1x32xf32, #tpu.memory_space<vmem>>, %arg4: memref<32x64xf32, #tpu.memory_space<vmem>>, %arg5: memref<1x64xf32, #tpu.memory_space<vmem>>, %arg6: memref<64x32xf32, #tpu.memory_space<vmem>>, %arg7: memref<1x32xf32, #tpu.memory_space<vmem>>, %arg8: memref<32x128xf32, #tpu.memory_space<vmem>>, %arg9: memref<1x128xf32, #tpu.memory_space<vmem>>, %arg10: memref<8x128xf32, #tpu.memory_space<vmem>>) attributes {dimension_semantics = [#tpu.dimension_semantics<parallel>], iteration_bounds = array<i64: 1>, scalar_prefetch = 0 : i64, scratch_operands = 0 : i64, tpu.core_type = #tpu.core_type<tc>, window_params = [{transform_indices = @transform_0, window_bounds = array<i64: 8, 16>}, {pipeline_mode = #tpu.pipeline_mode<synchronous>, transform_indices = @transform_1, window_bounds = array<i64: 16, 32>}, {pipeline_mode = #tpu.pipeline_mode<synchronous>, transform_indices = @transform_2, window_bounds = array<i64: 1, 32>}, {pipeline_mode = #tpu.pipeline_mode<synchronous>, transform_indices = @transform_3, window_bounds = array<i64: 32, 64>}, {pipeline_mode = #tpu.pipeline_mode<synchronous>, transform_indices = @transform_4, window_bounds = array<i64: 1, 64>}, {pipeline_mode = #tpu.pipeline_mode<synchronous>, transform_indices = @transform_5, window_bounds = array<i64: 64, 32>}, {pipeline_mode = #tpu.pipeline_mode<synchronous>, transform_indices = @transform_6, window_bounds = array<i64: 1, 32>}, {pipeline_mode = #tpu.pipeline_mode<synchronous>, transform_indices = @transform_7, window_bounds = array<i64: 32, 128>}, {pipeline_mode = #tpu.pipeline_mode<synchronous>, transform_indices = @transform_8, window_bounds = array<i64: 1, 128>}, {transform_indices = @transform_9, window_bounds = array<i64: 8, 128>}]} {
    %c0 = arith.constant 0 : index
    %c0_0 = arith.constant 0 : index
    %0 = vector.load %arg1[%c0, %c0_0] : memref<8x16xf32, #tpu.memory_space<vmem>>, vector<8x16xf32>
    %c0_1 = arith.constant 0 : index
    %c0_2 = arith.constant 0 : index
    %1 = vector.load %arg2[%c0_1, %c0_2] : memref<16x32xf32, #tpu.memory_space<vmem>>, vector<16x32xf32>
    %cst = arith.constant dense<0.000000e+00> : vector<8x32xf32>
    %2 = tpu.matmul %0, %1, %cst {dimension_numbers = #tpu.dot_dimension_numbers<[1], [0], [0], [1], [0, 0, 1, 1], [], []>} : vector<8x16xf32>, vector<16x32xf32>, vector<8x32xf32> -> vector<8x32xf32>
    %c0_3 = arith.constant 0 : index
    %c0_4 = arith.constant 0 : index
    %3 = vector.load %arg3[%c0_3, %c0_4] : memref<1x32xf32, #tpu.memory_space<vmem>>, vector<1x32xf32>
    %4 = vector.broadcast %3 : vector<1x32xf32> to vector<8x32xf32>
    %5 = arith.addf %2, %4 : vector<8x32xf32>
    %cst_5 = arith.constant 0.000000e+00 : f32
    %6 = vector.broadcast %cst_5 : f32 to vector<8x32xf32>
    %7 = arith.maximumf %5, %6 : vector<8x32xf32>
    %c0_6 = arith.constant 0 : index
    %c0_7 = arith.constant 0 : index
    %8 = vector.load %arg4[%c0_6, %c0_7] : memref<32x64xf32, #tpu.memory_space<vmem>>, vector<32x64xf32>
    %cst_8 = arith.constant dense<0.000000e+00> : vector<8x64xf32>
    %9 = tpu.matmul %7, %8, %cst_8 {dimension_numbers = #tpu.dot_dimension_numbers<[1], [0], [0], [1], [0, 0, 1, 1], [], []>} : vector<8x32xf32>, vector<32x64xf32>, vector<8x64xf32> -> vector<8x64xf32>
    %c0_9 = arith.constant 0 : index
    %c0_10 = arith.constant 0 : index
    %10 = vector.load %arg5[%c0_9, %c0_10] : memref<1x64xf32, #tpu.memory_space<vmem>>, vector<1x64xf32>
    %11 = vector.broadcast %10 : vector<1x64xf32> to vector<8x64xf32>
    %12 = arith.addf %9, %11 : vector<8x64xf32>
    %cst_11 = arith.constant 0.000000e+00 : f32
    %13 = vector.broadcast %cst_11 : f32 to vector<8x64xf32>
    %14 = arith.maximumf %12, %13 : vector<8x64xf32>
    %c0_12 = arith.constant 0 : index
    %c0_13 = arith.constant 0 : index
    %15 = vector.load %arg6[%c0_12, %c0_13] : memref<64x32xf32, #tpu.memory_space<vmem>>, vector<64x32xf32>
    %cst_14 = arith.constant dense<0.000000e+00> : vector<8x32xf32>
    %16 = tpu.matmul %14, %15, %cst_14 {dimension_numbers = #tpu.dot_dimension_numbers<[1], [0], [0], [1], [0, 0, 1, 1], [], []>} : vector<8x64xf32>, vector<64x32xf32>, vector<8x32xf32> -> vector<8x32xf32>
    %c0_15 = arith.constant 0 : index
    %c0_16 = arith.constant 0 : index
    %17 = vector.load %arg7[%c0_15, %c0_16] : memref<1x32xf32, #tpu.memory_space<vmem>>, vector<1x32xf32>
    %18 = vector.broadcast %17 : vector<1x32xf32> to vector<8x32xf32>
    %19 = arith.addf %16, %18 : vector<8x32xf32>
    %cst_17 = arith.constant 0.000000e+00 : f32
    %20 = vector.broadcast %cst_17 : f32 to vector<8x32xf32>
    %21 = arith.maximumf %19, %20 : vector<8x32xf32>
    %c0_18 = arith.constant 0 : index
    %c0_19 = arith.constant 0 : index
    %22 = vector.load %arg8[%c0_18, %c0_19] : memref<32x128xf32, #tpu.memory_space<vmem>>, vector<32x128xf32>
    %cst_20 = arith.constant dense<0.000000e+00> : vector<8x128xf32>
    %23 = tpu.matmul %21, %22, %cst_20 {dimension_numbers = #tpu.dot_dimension_numbers<[1], [0], [0], [1], [0, 0, 1, 1], [], []>} : vector<8x32xf32>, vector<32x128xf32>, vector<8x128xf32> -> vector<8x128xf32>
    %c0_21 = arith.constant 0 : index
    %c0_22 = arith.constant 0 : index
    %24 = vector.load %arg9[%c0_21, %c0_22] : memref<1x128xf32, #tpu.memory_space<vmem>>, vector<1x128xf32>
    %25 = vector.broadcast %24 : vector<1x128xf32> to vector<8x128xf32>
    %26 = arith.addf %23, %25 : vector<8x128xf32>
    %cst_23 = arith.constant 0.000000e+00 : f32
    %27 = vector.broadcast %cst_23 : f32 to vector<8x128xf32>
    %28 = arith.maximumf %26, %27 : vector<8x128xf32>
    %29 = math.absf %26 : vector<8x128xf32>
    %cst_24 = arith.constant 0.000000e+00 : f32
    %30 = vector.broadcast %cst_24 : f32 to vector<8x128xf32>
    %31 = arith.subf %30, %29 : vector<8x128xf32>
    %32 = math.exp %31 : vector<8x128xf32>
    %33 = math.log1p %32 : vector<8x128xf32>
    %34 = arith.addf %28, %33 : vector<8x128xf32>
    %c0_25 = arith.constant 0 : index
    %c0_26 = arith.constant 0 : index
    %35 = vector.load %arg10[%c0_25, %c0_26] : memref<8x128xf32, #tpu.memory_space<vmem>>, vector<8x128xf32>
    tpu.vector_store %arg10[%c0_25, %c0_26], %34 {strides = array<i32>} : memref<8x128xf32, #tpu.memory_space<vmem>>, vector<8x128xf32>,
    return
  }
  func.func @transform_0(%arg0: i32) -> (i32, i32) {
    %c0_i32 = arith.constant 0 : i32
    %c0_i32_0 = arith.constant 0 : i32
    return %arg0, %c0_i32 : i32, i32
  }
  func.func @transform_1(%arg0: i32) -> (i32, i32) {
    %c0_i32 = arith.constant 0 : i32
    %c0_i32_0 = arith.constant 0 : i32
    %c0_i32_1 = arith.constant 0 : i32
    return %c0_i32, %c0_i32_0 : i32, i32
  }
  func.func @transform_2(%arg0: i32) -> (i32, i32) {
    %c0_i32 = arith.constant 0 : i32
    %c0_i32_0 = arith.constant 0 : i32
    %c0_i32_1 = arith.constant 0 : i32
    return %c0_i32, %c0_i32_0 : i32, i32
  }
  func.func @transform_3(%arg0: i32) -> (i32, i32) {
    %c0_i32 = arith.constant 0 : i32
    %c0_i32_0 = arith.constant 0 : i32
    %c0_i32_1 = arith.constant 0 : i32
    return %c0_i32, %c0_i32_0 : i32, i32
  }
  func.func @transform_4(%arg0: i32) -> (i32, i32) {
    %c0_i32 = arith.constant 0 : i32
    %c0_i32_0 = arith.constant 0 : i32
    %c0_i32_1 = arith.constant 0 : i32
    return %c0_i32, %c0_i32_0 : i32, i32
  }
  func.func @transform_5(%arg0: i32) -> (i32, i32) {
    %c0_i32 = arith.constant 0 : i32
    %c0_i32_0 = arith.constant 0 : i32
    %c0_i32_1 = arith.constant 0 : i32
    return %c0_i32, %c0_i32_0 : i32, i32
  }
  func.func @transform_6(%arg0: i32) -> (i32, i32) {
    %c0_i32 = arith.constant 0 : i32
    %c0_i32_0 = arith.constant 0 : i32
    %c0_i32_1 = arith.constant 0 : i32
    return %c0_i32, %c0_i32_0 : i32, i32
  }
  func.func @transform_7(%arg0: i32) -> (i32, i32) {
    %c0_i32 = arith.constant 0 : i32
    %c0_i32_0 = arith.constant 0 : i32
    %c0_i32_1 = arith.constant 0 : i32
    return %c0_i32, %c0_i32_0 : i32, i32
  }
  func.func @transform_8(%arg0: i32) -> (i32, i32) {
    %c0_i32 = arith.constant 0 : i32
    %c0_i32_0 = arith.constant 0 : i32
    %c0_i32_1 = arith.constant 0 : i32
    return %c0_i32, %c0_i32_0 : i32, i32
  }
  func.func @transform_9(%arg0: i32) -> (i32, i32) {
    %c0_i32 = arith.constant 0 : i32
    %c0_i32_0 = arith.constant 0 : i32
    return %arg0, %c0_i32 : i32, i32
  }
}

</mosaic_0001>

<llo_original>
// kernel: nb_decoder_forward.1
$region0: #{nb_decoder_forward.1}
  #allocation0 [shape = 'u32[]', space=smem, size = 0x4, offset = 0x4, fixed_abs, tag = 'smem constant byte address 0x4 - core index']
  #allocation1 [shape = 'u32[144,128]{1,0:T(1,128)}', space=vmem, size = 0x12000, scoped, tag = 'internal scratch']
  %s0 = inlined_call_operand.vmem [shape: f32[8,16], index: 0, kind: input, shape index: {}]
  %s1 = inlined_call_operand.vmem [shape: f32[16,32], index: 1, kind: input, shape index: {}]
  %s2 = inlined_call_operand.vmem [shape: f32[1,32], index: 2, kind: input, shape index: {}]
  %s3 = inlined_call_operand.vmem [shape: f32[32,64], index: 3, kind: input, shape index: {}]
  %s4 = inlined_call_operand.vmem [shape: f32[1,64], index: 4, kind: input, shape index: {}]
  %s5 = inlined_call_operand.vmem [shape: f32[64,32], index: 5, kind: input, shape index: {}]
  %s6 = inlined_call_operand.vmem [shape: f32[1,32], index: 6, kind: input, shape index: {}]
  %s7 = inlined_call_operand.vmem [shape: f32[32,128], index: 7, kind: input, shape index: {}]
  %s8 = inlined_call_operand.vmem [shape: f32[1,128], index: 8, kind: input, shape index: {}]
  %s9 = inlined_call_operand.vmem [shape: f32[8,128], index: 9, kind: output, shape index: {}]
  %s10 = sld [smem:[#allocation0]]
  $region46: #{nb_decoder_forward.1} parent=0
    _
  %s12 = ssub.s32 1, %s10
  %s13 = scalar_select 0, %s12, %s10
  // Predicated region
  $region2: #{nb_decoder_forward.1} parent=0 // pred_check
    _
  $region3: #{nb_decoder_forward.1} parent=0 // pred_check_branch
    %15 = sbr.rel (0) target = $region5
  $region4: #{nb_decoder_forward.1} parent=0 // pred_region
    _
  $region5: #{nb_decoder_forward.1} parent=0 // pred_fallthru
    _
  // Predicated region
  $region6: #{nb_decoder_forward.1} parent=0 // pred_check
    _
  $region7: #{nb_decoder_forward.1} parent=0 // pred_check_branch
    %17 = sbr.rel (0) target = $region9
  $region8: #{nb_decoder_forward.1} parent=0 // pred_region
    _
  $region9: #{nb_decoder_forward.1} parent=0 // pred_fallthru
    _
  // Predicated region
  $region10: #{nb_decoder_forward.1} parent=0 // pred_check
    _
  $region11: #{nb_decoder_forward.1} parent=0 // pred_check_branch
    %19 = sbr.rel (0) target = $region13
  $region12: #{nb_decoder_forward.1} parent=0 // pred_region
    _
  $region13: #{nb_decoder_forward.1} parent=0 // pred_fallthru
    _
  // Predicated region
  $region14: #{nb_decoder_forward.1} parent=0 // pred_check
    _
  $region15: #{nb_decoder_forward.1} parent=0 // pred_check_branch
    %21 = sbr.rel (0) target = $region17
  $region16: #{nb_decoder_forward.1} parent=0 // pred_region
    _
  $region17: #{nb_decoder_forward.1} parent=0 // pred_fallthru
    _
  // Predicated region
  $region18: #{nb_decoder_forward.1} parent=0 // pred_check
    _
  $region19: #{nb_decoder_forward.1} parent=0 // pred_check_branch
    %23 = sbr.rel (0) target = $region21
  $region20: #{nb_decoder_forward.1} parent=0 // pred_region
    _
  $region21: #{nb_decoder_forward.1} parent=0 // pred_fallthru
    _
  // Predicated region
  $region22: #{nb_decoder_forward.1} parent=0 // pred_check
    _
  $region23: #{nb_decoder_forward.1} parent=0 // pred_check_branch
    %25 = sbr.rel (0) target = $region25
  $region24: #{nb_decoder_forward.1} parent=0 // pred_region
    _
  $region25: #{nb_decoder_forward.1} parent=0 // pred_fallthru
    _
  // Predicated region
  $region26: #{nb_decoder_forward.1} parent=0 // pred_check
    _
  $region27: #{nb_decoder_forward.1} parent=0 // pred_check_branch
    %27 = sbr.rel (0) target = $region29
  $region28: #{nb_decoder_forward.1} parent=0 // pred_region
    _
  $region29: #{nb_decoder_forward.1} parent=0 // pred_fallthru
    _
  // Predicated region
  $region30: #{nb_decoder_forward.1} parent=0 // pred_check
    _
  $region31: #{nb_decoder_forward.1} parent=0 // pred_check_branch
    %29 = sbr.rel (0) target = $region33
  $region32: #{nb_decoder_forward.1} parent=0 // pred_region
    _
  $region33: #{nb_decoder_forward.1} parent=0 // pred_fallthru
    _
  // Predicated region
  $region34: #{nb_decoder_forward.1} parent=0 // pred_check
    _
  $region35: #{nb_decoder_forward.1} parent=0 // pred_check_branch
    %31 = sbr.rel (0) target = $region37
  $region36: #{nb_decoder_forward.1} parent=0 // pred_region
    _
  $region37: #{nb_decoder_forward.1} parent=0 // pred_fallthru
    _
  %v32 = vld [vmem:[%s0] sm:$0xff]
  %v33 = vld [vmem:[%s1] sm:$0xff]
  %v34 = vld [vmem:[%s1 + $0x8] sm:$0xff]
  %v35 = vld [vmem:[%s2] sm:$0x1]
  %v37 = vlaneseq
  %v38 = vshrl.u32 %v37, 7
  %v39 = vsub.s32 0, %v38
  %v40 = vrot.slane %v35, %v39
  %vm42 = vcmask 130048
  %v44 = vsel %vm42, %v32, 0
  %46 = vmatprep.subr.mxu0 0.0
  %47 = vmatpush1.msra.mxu0 0.0
  %48 = vmatprep.subr.mxu0 0.0
  %49 = vmatpush1.msra.mxu0 0.0
  %50 = vmatprep.subr.mxu0 0.0
  %51 = vmatpush1.msra.mxu0 0.0
  %52 = vmatprep.subr.mxu0 0.0
  %53 = vmatpush1.msra.mxu0 0.0
  %54 = vmatprep.subr.mxu0 0.0
  %55 = vmatpush1.msra.mxu0 0.0
  %56 = vmatprep.subr.mxu0 0.0
  %57 = vmatpush1.msra.mxu0 0.0
  %58 = vmatprep.subr.mxu0 0.0
  %59 = vmatpush1.msra.mxu0 0.0
  %60 = vmatprep.subr.mxu0 0.0
  %61 = vmatpush1.msra.mxu0 0.0
  %62 = vmatprep.subr.mxu0 0.0
  %63 = vmatpush1.msra.mxu0 0.0
  %64 = vmatprep.subr.mxu0 0.0
  %65 = vmatpush1.msra.mxu0 0.0
  %66 = vmatprep.subr.mxu0 0.0
  %67 = vmatpush1.msra.mxu0 0.0
  %68 = vmatprep.subr.mxu0 0.0
  %69 = vmatpush1.msra.mxu0 0.0
  %70 = vmatprep.subr.mxu0 0.0
  %71 = vmatpush1.msra.mxu0 0.0
  %72 = vmatprep.subr.mxu0 0.0
  %73 = vmatpush1.msra.mxu0 0.0
  %74 = vmatprep.subr.mxu0 0.0
  %75 = vmatpush1.msra.mxu0 %v34
  %76 = vmatprep.subr.mxu0 0.0
  %77 = vmatpush1.msra.mxu0 %v33
  %78 = vmatprep.subr.mxu0 0.0
  %79 = vmatpush2.msra.mxu0 0.0
  %80 = vmatprep.subr.mxu0 0.0
  %81 = vmatpush2.msra.mxu0 0.0
  %82 = vmatprep.subr.mxu0 0.0
  %83 = vmatpush2.msra.mxu0 0.0
  %84 = vmatprep.subr.mxu0 0.0
  %85 = vmatpush2.msra.mxu0 0.0
  %86 = vmatprep.subr.mxu0 0.0
  %87 = vmatpush2.msra.mxu0 0.0
  %88 = vmatprep.subr.mxu0 0.0
  %89 = vmatpush2.msra.mxu0 0.0
  %90 = vmatprep.subr.mxu0 0.0
  %91 = vmatpush2.msra.mxu0 0.0
  %92 = vmatprep.subr.mxu0 0.0
  %93 = vmatpush2.msra.mxu0 0.0
  %94 = vmatprep.subr.mxu0 0.0
  %95 = vmatpush2.msra.mxu0 0.0
  %96 = vmatprep.subr.mxu0 0.0
  %97 = vmatpush2.msra.mxu0 0.0
  %98 = vmatprep.subr.mxu0 0.0
  %99 = vmatpush2.msra.mxu0 0.0
  %100 = vmatprep.subr.mxu0 0.0
  %101 = vmatpush2.msra.mxu0 0.0
  %102 = vmatprep.subr.mxu0 0.0
  %103 = vmatpush2.msra.mxu0 0.0
  %104 = vmatprep.subr.mxu0 0.0
  %105 = vmatpush2.msra.mxu0 0.0
  %106 = vmatprep.subr.mxu0 0.0
  %107 = vmatpush2.msra.mxu0 0.0
  %108 = vmatprep.subr.mxu0 0.0
  %109 = vmatpush2.msra.mxu0 0.0
  %110 = vmatprep.mubr.f32.mxu0 0.0
  %111 = vmatmul.mubr.f32.gmra.mxu0 %v44
  %v112 = vpop.f32.mrf.mxu0
  %v113 = vadd.f32 %v40, %v112
  %v114 = vpop.f32.mrf.mxu0
  %115 = vdwg.mxu0
  %v116 = vmax.f32 %v113, 0.0
  %v117 = vld [vmem:[%s3] sm:$0xff]
  %v118 = vld [vmem:[%s3 + $0x8] sm:$0xff]
  %v119 = vld [vmem:[%s3 + $0x10] sm:$0xff]
  %v120 = vld [vmem:[%s3 + $0x18] sm:$0xff]
  %v121 = vld [vmem:[%s4] sm:$0x1]
  %v123 = vlaneseq
  %v124 = vshrl.u32 %v123, 7
  %v125 = vsub.s32 0, %v124
  %v126 = vrot.slane %v121, %v125
  %vm128 = vcmask 261120
  %v130 = vsel %vm128, %v116, 0
  %132 = vmatprep.subr.mxu0 0.0
  %133 = vmatpush1.msra.mxu0 0.0
  %134 = vmatprep.subr.mxu0 0.0
  %135 = vmatpush1.msra.mxu0 0.0
  %136 = vmatprep.subr.mxu0 0.0
  %137 = vmatpush1.msra.mxu0 0.0
  %138 = vmatprep.subr.mxu0 0.0
  %139 = vmatpush1.msra.mxu0 0.0
  %140 = vmatprep.subr.mxu0 0.0
  %141 = vmatpush1.msra.mxu0 0.0
  %142 = vmatprep.subr.mxu0 0.0
  %143 = vmatpush1.msra.mxu0 0.0
  %144 = vmatprep.subr.mxu0 0.0
  %145 = vmatpush1.msra.mxu0 0.0
  %146 = vmatprep.subr.mxu0 0.0
  %147 = vmatpush1.msra.mxu0 0.0
  %148 = vmatprep.subr.mxu0 0.0
  %149 = vmatpush1.msra.mxu0 0.0
  %150 = vmatprep.subr.mxu0 0.0
  %151 = vmatpush1.msra.mxu0 0.0
  %152 = vmatprep.subr.mxu0 0.0
  %153 = vmatpush1.msra.mxu0 0.0
  %154 = vmatprep.subr.mxu0 0.0
  %155 = vmatpush1.msra.mxu0 0.0
  %156 = vmatprep.subr.mxu0 0.0
  %157 = vmatpush1.msra.mxu0 %v120
  %158 = vmatprep.subr.mxu0 0.0
  %159 = vmatpush1.msra.mxu0 %v119
  %160 = vmatprep.subr.mxu0 0.0
  %161 = vmatpush1.msra.mxu0 %v118
  %162 = vmatprep.subr.mxu0 0.0
  %163 = vmatpush1.msra.mxu0 %v117
  %164 = vmatprep.subr.mxu0 0.0
  %165 = vmatpush2.msra.mxu0 0.0
  %166 = vmatprep.subr.mxu0 0.0
  %167 = vmatpush2.msra.mxu0 0.0
  %168 = vmatprep.subr.mxu0 0.0
  %169 = vmatpush2.msra.mxu0 0.0
  %170 = vmatprep.subr.mxu0 0.0
  %171 = vmatpush2.msra.mxu0 0.0
  %172 = vmatprep.subr.mxu0 0.0
  %173 = vmatpush2.msra.mxu0 0.0
  %174 = vmatprep.subr.mxu0 0.0
  %175 = vmatpush2.msra.mxu0 0.0
  %176 = vmatprep.subr.mxu0 0.0
  %177 = vmatpush2.msra.mxu0 0.0
  %178 = vmatprep.subr.mxu0 0.0
  %179 = vmatpush2.msra.mxu0 0.0
  %180 = vmatprep.subr.mxu0 0.0
  %181 = vmatpush2.msra.mxu0 0.0
  %182 = vmatprep.subr.mxu0 0.0
  %183 = vmatpush2.msra.mxu0 0.0
  %184 = vmatprep.subr.mxu0 0.0
  %185 = vmatpush2.msra.mxu0 0.0
  %186 = vmatprep.subr.mxu0 0.0
  %187 = vmatpush2.msra.mxu0 0.0
  %188 = vmatprep.subr.mxu0 0.0
  %189 = vmatpush2.msra.mxu0 0.0
  %190 = vmatprep.subr.mxu0 0.0
  %191 = vmatpush2.msra.mxu0 0.0
  %192 = vmatprep.subr.mxu0 0.0
  %193 = vmatpush2.msra.mxu0 0.0
  %194 = vmatprep.subr.mxu0 0.0
  %195 = vmatpush2.msra.mxu0 0.0
  %196 = vmatprep.mubr.f32.mxu0 0.0
  %197 = vmatmul.mubr.f32.gmra.mxu0 %v130
  %v198 = vpop.f32.mrf.mxu0
  %v199 = vadd.f32 %v126, %v198
  %v200 = vpop.f32.mrf.mxu0
  %201 = vdwg.mxu0
  %v202 = vmax.f32 %v199, 0.0
  %v203 = vld [vmem:[%s5] sm:$0xff]
  %v204 = vld [vmem:[%s5 + $0x8] sm:$0xff]
  %v205 = vld [vmem:[%s5 + $0x10] sm:$0xff]
  %v206 = vld [vmem:[%s5 + $0x18] sm:$0xff]
  %v207 = vld [vmem:[%s5 + $0x20] sm:$0xff]
  %v208 = vld [vmem:[%s5 + $0x28] sm:$0xff]
  %v209 = vld [vmem:[%s5 + $0x30] sm:$0xff]
  %v210 = vld [vmem:[%s5 + $0x38] sm:$0xff]
  %v211 = vld [vmem:[%s6] sm:$0x1]
  %v213 = vlaneseq
  %v214 = vshrl.u32 %v213, 7
  %v215 = vsub.s32 0, %v214
  %v216 = vrot.slane %v211, %v215
  %vm218 = vcmask 523264
  %v220 = vsel %vm218, %v202, 0
  %222 = vmatprep.subr.mxu0 0.0
  %223 = vmatpush1.msra.mxu0 0.0
  %224 = vmatprep.subr.mxu0 0.0
  %225 = vmatpush1.msra.mxu0 0.0
  %226 = vmatprep.subr.mxu0 0.0
  %227 = vmatpush1.msra.mxu0 0.0
  %228 = vmatprep.subr.mxu0 0.0
  %229 = vmatpush1.msra.mxu0 0.0
  %230 = vmatprep.subr.mxu0 0.0
  %231 = vmatpush1.msra.mxu0 0.0
  %232 = vmatprep.subr.mxu0 0.0
  %233 = vmatpush1.msra.mxu0 0.0
  %234 = vmatprep.subr.mxu0 0.0
  %235 = vmatpush1.msra.mxu0 0.0
  %236 = vmatprep.subr.mxu0 0.0
  %237 = vmatpush1.msra.mxu0 0.0
  %238 = vmatprep.subr.mxu0 0.0
  %239 = vmatpush1.msra.mxu0 %v210
  %240 = vmatprep.subr.mxu0 0.0
  %241 = vmatpush1.msra.mxu0 %v209
  %242 = vmatprep.subr.mxu0 0.0
  %243 = vmatpush1.msra.mxu0 %v208
  %244 = vmatprep.subr.mxu0 0.0
  %245 = vmatpush1.msra.mxu0 %v207
  %246 = vmatprep.subr.mxu0 0.0
  %247 = vmatpush1.msra.mxu0 %v206
  %248 = vmatprep.subr.mxu0 0.0
  %249 = vmatpush1.msra.mxu0 %v205
  %250 = vmatprep.subr.mxu0 0.0
  %251 = vmatpush1.msra.mxu0 %v204
  %252 = vmatprep.subr.mxu0 0.0
  %253 = vmatpush1.msra.mxu0 %v203
  %254 = vmatprep.subr.mxu0 0.0
  %255 = vmatpush2.msra.mxu0 0.0
  %256 = vmatprep.subr.mxu0 0.0
  %257 = vmatpush2.msra.mxu0 0.0
  %258 = vmatprep.subr.mxu0 0.0
  %259 = vmatpush2.msra.mxu0 0.0
  %260 = vmatprep.subr.mxu0 0.0
  %261 = vmatpush2.msra.mxu0 0.0
  %262 = vmatprep.subr.mxu0 0.0
  %263 = vmatpush2.msra.mxu0 0.0
  %264 = vmatprep.subr.mxu0 0.0
  %265 = vmatpush2.msra.mxu0 0.0
  %266 = vmatprep.subr.mxu0 0.0
  %267 = vmatpush2.msra.mxu0 0.0
  %268 = vmatprep.subr.mxu0 0.0
  %269 = vmatpush2.msra.mxu0 0.0
  %270 = vmatprep.subr.mxu0 0.0
  %271 = vmatpush2.msra.mxu0 0.0
  %272 = vmatprep.subr.mxu0 0.0
  %273 = vmatpush2.msra.mxu0 0.0
  %274 = vmatprep.subr.mxu0 0.0
  %275 = vmatpush2.msra.mxu0 0.0
  %276 = vmatprep.subr.mxu0 0.0
  %277 = vmatpush2.msra.mxu0 0.0
  %278 = vmatprep.subr.mxu0 0.0
  %279 = vmatpush2.msra.mxu0 0.0
  %280 = vmatprep.subr.mxu0 0.0
  %281 = vmatpush2.msra.mxu0 0.0
  %282 = vmatprep.subr.mxu0 0.0
  %283 = vmatpush2.msra.mxu0 0.0
  %284 = vmatprep.subr.mxu0 0.0
  %285 = vmatpush2.msra.mxu0 0.0
  %286 = vmatprep.mubr.f32.mxu0 0.0
  %287 = vmatmul.mubr.f32.gmra.mxu0 %v220
  %v288 = vpop.f32.mrf.mxu0
  %v289 = vadd.f32 %v216, %v288
  %v290 = vpop.f32.mrf.mxu0
  %291 = vdwg.mxu0
  %v292 = vmax.f32 %v289, 0.0
  %v293 = vld [vmem:[%s7] sm:$0xff]
  %v294 = vld [vmem:[%s7 + $0x8] sm:$0xff]
  %v295 = vld [vmem:[%s7 + $0x10] sm:$0xff]
  %v296 = vld [vmem:[%s7 + $0x18] sm:$0xff]
  %v297 = vld [vmem:[%s8] sm:$0x1]
  %v299 = vlaneseq
  %v300 = vshrl.u32 %v299, 7
  %v301 = vsub.s32 0, %v300
  %v302 = vrot.slane %v297, %v301
  %v305 = vsel %vm128, %v292, 0
  %307 = vmatprep.subr.mxu0 0.0
  %308 = vmatpush1.msra.mxu0 0.0
  %309 = vmatprep.subr.mxu0 0.0
  %310 = vmatpush1.msra.mxu0 0.0
  %311 = vmatprep.subr.mxu0 0.0
  %312 = vmatpush1.msra.mxu0 0.0
  %313 = vmatprep.subr.mxu0 0.0
  %314 = vmatpush1.msra.mxu0 0.0
  %315 = vmatprep.subr.mxu0 0.0
  %316 = vmatpush1.msra.mxu0 0.0
  %317 = vmatprep.subr.mxu0 0.0
  %318 = vmatpush1.msra.mxu0 0.0
  %319 = vmatprep.subr.mxu0 0.0
  %320 = vmatpush1.msra.mxu0 0.0
  %321 = vmatprep.subr.mxu0 0.0
  %322 = vmatpush1.msra.mxu0 0.0
  %323 = vmatprep.subr.mxu0 0.0
  %324 = vmatpush1.msra.mxu0 0.0
  %325 = vmatprep.subr.mxu0 0.0
  %326 = vmatpush1.msra.mxu0 0.0
  %327 = vmatprep.subr.mxu0 0.0
  %328 = vmatpush1.msra.mxu0 0.0
  %329 = vmatprep.subr.mxu0 0.0
  %330 = vmatpush1.msra.mxu0 0.0
  %331 = vmatprep.subr.mxu0 0.0
  %332 = vmatpush1.msra.mxu0 %v296
  %333 = vmatprep.subr.mxu0 0.0
  %334 = vmatpush1.msra.mxu0 %v295
  %335 = vmatprep.subr.mxu0 0.0
  %336 = vmatpush1.msra.mxu0 %v294
  %337 = vmatprep.subr.mxu0 0.0
  %338 = vmatpush1.msra.mxu0 %v293
  %339 = vmatprep.subr.mxu0 0.0
  %340 = vmatpush2.msra.mxu0 0.0
  %341 = vmatprep.subr.mxu0 0.0
  %342 = vmatpush2.msra.mxu0 0.0
  %343 = vmatprep.subr.mxu0 0.0
  %344 = vmatpush2.msra.mxu0 0.0
  %345 = vmatprep.subr.mxu0 0.0
  %346 = vmatpush2.msra.mxu0 0.0
  %347 = vmatprep.subr.mxu0 0.0
  %348 = vmatpush2.msra.mxu0 0.0
  %349 = vmatprep.subr.mxu0 0.0
  %350 = vmatpush2.msra.mxu0 0.0
  %351 = vmatprep.subr.mxu0 0.0
  %352 = vmatpush2.msra.mxu0 0.0
  %353 = vmatprep.subr.mxu0 0.0
  %354 = vmatpush2.msra.mxu0 0.0
  %355 = vmatprep.subr.mxu0 0.0
  %356 = vmatpush2.msra.mxu0 0.0
  %357 = vmatprep.subr.mxu0 0.0
  %358 = vmatpush2.msra.mxu0 0.0
  %359 = vmatprep.subr.mxu0 0.0
  %360 = vmatpush2.msra.mxu0 0.0
  %361 = vmatprep.subr.mxu0 0.0
  %362 = vmatpush2.msra.mxu0 0.0
  %363 = vmatprep.subr.mxu0 0.0
  %364 = vmatpush2.msra.mxu0 0.0
  %365 = vmatprep.subr.mxu0 0.0
  %366 = vmatpush2.msra.mxu0 0.0
  %367 = vmatprep.subr.mxu0 0.0
  %368 = vmatpush2.msra.mxu0 0.0
  %369 = vmatprep.subr.mxu0 0.0
  %370 = vmatpush2.msra.mxu0 0.0
  %371 = vmatprep.mubr.f32.mxu0 0.0
  %372 = vmatmul.mubr.f32.gmra.mxu0 %v305
  %v373 = vpop.f32.mrf.mxu0
  %v374 = vadd.f32 %v302, %v373
  %v375 = vpop.f32.mrf.mxu0
  %376 = vdwg.mxu0
  %v377 = vmax.f32 %v374, 0.0
  %v378 = vand.u32 2147483647, %v374
  %v379 = vsub.f32 0.0, %v378
  %v380 = vmul.f32 %v379, 1.442695
  %v381 = vpow.pop %v380
  %v382 = vadd.f32 %v381, 1.0
  %v383 = vlog2.pop %v382
  %v384 = vmul.f32 %v383, 0.6931472
  %v385 = vmul.f32 -0.5, %v381
  %v386 = vadd.f32 %v385, 1.0
  %v387 = vmul.f32 %v386, %v381
  %v388 = vand.u32 2147483647, %v381
  %vm389 = vcmp.lt.f32.partialorder %v388, 0.0004427343
  %v390 = vsel %vm389, %v387, %v384
  %v391 = vadd.f32 %v377, %v390
  %392 = vst [vmem:[%s9] sm:$0xff] %v391
  // Predicated region
  $region38: #{nb_decoder_forward.1} parent=0 // pred_check
    _
  $region39: #{nb_decoder_forward.1} parent=0 // pred_check_branch
    %394 = sbr.rel (0) target = $region41
  $region40: #{nb_decoder_forward.1} parent=0 // pred_region
    _
  $region41: #{nb_decoder_forward.1} parent=0 // pred_fallthru
    _
  // Predicated region
  $region42: #{nb_decoder_forward.1} parent=0 // pred_check
    _
  $region43: #{nb_decoder_forward.1} parent=0 // pred_check_branch
    %396 = sbr.rel (0) target = $region45
  $region44: #{nb_decoder_forward.1} parent=0 // pred_region
    _
  $region45: #{nb_decoder_forward.1} parent=0 // pred_fallthru
    _

</llo_original>
